<compile_context>
chip_gen: v6e
topology: v6e:2x2x1
jax: 0.10.0
libtpu: 0.0.40
codegen_flags: <defaults>
</compile_context>

<pallas_src>
import math

import jax
import jax.numpy as jnp
from jax.experimental import pallas as pl
from jax.experimental.pallas import tpu as pltpu


def _pe_add_kernel(x_ref, pe_ref, o_ref):
    # Elementwise add. pe broadcasts over the leading (batch) dim in the fast path
    # where the block carries the whole batch; in the tiled path both blocks are
    # (1, tile_s, D_eff). Dtype cast happens here (no wrapper-side astype pass).
    o_ref[...] = (x_ref[...] + pe_ref[...]).astype(o_ref.dtype)


def _lane_fold(S, D):
    """Smallest k with S % k == 0 and (k * D) % 128 == 0; returns 1 if none."""
    if D % 128 == 0:
        return 1
    k = 128 // math.gcd(D, 128)
    return k if S % k == 0 else 1


def positional_encoding(x, pe, *, seq_tile_cap=1024,
                        vmem_budget_bytes=24 * 1024 * 1024,
                        fast_path_bytes=128 * 1024):
    """Compute x + pe[:, :S] with a Pallas TPU kernel.

    x : (B, S, D) activations.
    pe: (1, max_len, D) learned positional table, max_len >= S.
    """
    B, S, D = x.shape
    assert pe.ndim == 3 and pe.shape[0] == 1 and pe.shape[2] == D, "pe must be (1, max_len, D)"
    max_len = pe.shape[1]
    assert S <= max_len, "sequence longer than positional table"

    out_dtype = x.dtype
    itemsize = jnp.dtype(out_dtype).itemsize

    # Lane-dense view: fold k sequence rows into the lane axis so the last dim is a
    # multiple of 128 (unmasked stores).  The fold is consistent for x and pe because
    # the add is purely elementwise over (seq, d_model).
    k = _lane_fold(S, D)
    S_eff, D_eff = S // k, k * D
    x_eff = x.reshape(B, S_eff, D_eff) if k > 1 else x

    # ---------------- small-problem fast path: one step, whole slabs ----------------
    if S_eff < 8 or B * S_eff * D_eff * itemsize <= fast_path_bytes:
        # Slicing pe here is negligible (tiny problem) and lets the whole-array
        # blocks satisfy the (8, 128) / full-dim rule exactly.
        pe_eff = jax.lax.slice(pe, (0, 0, 0), (1, S, D)).reshape(1, S_eff, D_eff)
        out = pl.pallas_call(
            _pe_add_kernel,
            out_shape=jax.ShapeDtypeStruct((B, S_eff, D_eff), out_dtype),
        )(x_eff, pe_eff)
        return out.reshape(B, S, D) if k > 1 else out

    # ---------------- tiled path ------------------------------------------------------
    # Pass the pe table whole (reshaped view only, no HBM copy) — the index_map keeps
    # reads to the first ceil(S_eff / tile_s) blocks.
    if k == 1:
        pe_eff = pe
    elif max_len % k == 0:
        pe_eff = pe.reshape(1, max_len // k, D_eff)          # free metadata reshape
    else:
        pe_eff = jax.lax.slice(pe, (0, 0, 0), (1, S, D)).reshape(1, S_eff, D_eff)

    # VMEM-budget-driven tile size: 3 streams (x, pe, out) x 2 pipeline buffers.
    row_bytes = D_eff * itemsize
    max_tile = max(8, vmem_budget_bytes // (6 * row_bytes))
    tile_s = min(seq_tile_cap, S_eff, max_tile)
    tile_s = max(8, (tile_s // 8) * 8)                        # sublane-aligned

    n_seq_tiles = pl.cdiv(S_eff, tile_s)
    # Batch innermost: consecutive steps reuse the SAME pe block -> no re-DMA of pe.
    grid = (n_seq_tiles, B)

    x_spec = pl.BlockSpec((1, tile_s, D_eff), lambda s, b: (b, s, 0))
    pe_spec = pl.BlockSpec((1, tile_s, D_eff), lambda s, b: (0, s, 0))

    out = pl.pallas_call(
        _pe_add_kernel,
        out_shape=jax.ShapeDtypeStruct((B, S_eff, D_eff), out_dtype),
        grid=grid,
        in_specs=[x_spec, pe_spec],
        out_specs=x_spec,
        compiler_params=pltpu.CompilerParams(
            # Megacore shards over seq tiles; batch stays sequential so each core's
            # pe block stays resident across its batch run.
            dimension_semantics=("parallel", "arbitrary"),
            vmem_limit_bytes=32 * 1024 * 1024,
        ),
    )(x_eff, pe_eff)
    return out.reshape(B, S, D) if k > 1 else out


def reference_positional_encoding(x, pe):
    """Pure-JAX reference mirroring the PyTorch forward."""
    return x + pe[:, :x.shape[1]]


if __name__ == "__main__":
    root = jax.random.PRNGKey(0)
    k1, k2, k3, k4 = jax.random.split(root, 4)

    # 1) Module-consistent small shapes: batch=2, seq=8, d_model=32 (fast path,
    #    lane-folded k=4 -> (2, 2, 128) slabs, single grid step).
    B, S, D, MAX_LEN = 2, 8, 32, 64
    x = jax.random.normal(k1, (B, S, D), dtype=jnp.float32)
    pe = (0.02 * jax.random.normal(k2, (1, MAX_LEN, D))).astype(jnp.float32)  # nn.init.normal_(std=0.02)
    out = jax.block_until_ready(positional_encoding(x, pe))
    assert out.shape == (B, S, D)
    assert jnp.allclose(out, reference_positional_encoding(x, pe), atol=1e-6, rtol=1e-6), \
        "mismatch vs. JAX reference (fast path)"

    # 2) Moderate shapes exercising the tiled grid path: ragged final seq tile,
    #    batch-innermost grid, pe kept VMEM-resident across batch steps.
    B2, S2, D2, MAX_LEN2 = 2, 1100, 128, 2048
    x2 = jax.random.normal(k3, (B2, S2, D2), dtype=jnp.float32)
    pe2 = (0.02 * jax.random.normal(k4, (1, MAX_LEN2, D2))).astype(jnp.float32)
    out2 = jax.block_until_ready(positional_encoding(x2, pe2))
    assert out2.shape == (B2, S2, D2)
    assert jnp.allclose(out2, reference_positional_encoding(x2, pe2), atol=1e-6, rtol=1e-6), \
        "mismatch vs. JAX reference (tiled path)"

    print("KERNEL_OK")
</pallas_src>

<mosaic_0001>
module attributes {stable_mosaic.version = 11 : i64} {
  func.func @_pe_add_kernel(%arg0: memref<2x2x128xf32, #tpu.memory_space<vmem>>, %arg1: memref<1x2x128xf32, #tpu.memory_space<vmem>>, %arg2: memref<2x2x128xf32, #tpu.memory_space<vmem>>) attributes {dimension_semantics = [], scalar_prefetch = 0 : i64, scratch_operands = 0 : i64, tpu.core_type = #tpu.core_type<tc>} {
    %c0 = arith.constant 0 : index
    %c0_0 = arith.constant 0 : index
    %c0_1 = arith.constant 0 : index
    %0 = vector.load %arg0[%c0, %c0_0, %c0_1] : memref<2x2x128xf32, #tpu.memory_space<vmem>>, vector<2x2x128xf32>
    %c0_2 = arith.constant 0 : index
    %c0_3 = arith.constant 0 : index
    %c0_4 = arith.constant 0 : index
    %1 = vector.load %arg1[%c0_2, %c0_3, %c0_4] : memref<1x2x128xf32, #tpu.memory_space<vmem>>, vector<1x2x128xf32>
    %2 = vector.broadcast %1 : vector<1x2x128xf32> to vector<2x2x128xf32>
    %3 = arith.addf %0, %2 : vector<2x2x128xf32>
    %c0_5 = arith.constant 0 : index
    %c0_6 = arith.constant 0 : index
    %c0_7 = arith.constant 0 : index
    %4 = vector.load %arg2[%c0_5, %c0_6, %c0_7] : memref<2x2x128xf32, #tpu.memory_space<vmem>>, vector<2x2x128xf32>
    tpu.vector_store %arg2[%c0_5, %c0_6, %c0_7], %3 {strides = array<i32>} : memref<2x2x128xf32, #tpu.memory_space<vmem>>, vector<2x2x128xf32>,
    return
  }
}

</mosaic_0001>

<llo_original>
// kernel: tpu_custom_call.1
$region0: #{tpu_custom_call.1}
  #allocation0 [shape = 'u32[]', space=smem, size = 0x4, offset = 0x4, fixed_abs, tag = 'smem constant byte address 0x4 - core index']
  #allocation1 [shape = 'u32[144,128]{1,0:T(1,128)}', space=vmem, size = 0x12000, scoped, tag = 'internal scratch']
  %s0 = inlined_call_operand.hbm [shape: f32[2,2,128], index: 0, kind: input, shape index: {}]
  %s1 = inlined_call_operand.hbm [shape: f32[1,2,128], index: 1, kind: input, shape index: {}]
  %s2 = inlined_call_operand.hbm [shape: f32[2,2,128], index: 2, kind: output, shape index: {}]
  %s3 = sld [smem:[#allocation0]]
  $region26: #{tpu_custom_call.1} parent=0
    _
  %s5 = ssub.s32 1, %s3
  %s6 = scalar_select 0, %s5, %s3
  $region1: #{tpu_custom_call.1} parent=0
    #allocation2 [shape = 'u8[2048]{0}', space=vmem, size = 0x800, scoped, tag = 'input window, operand 0, single buffered']
    #allocation3 [shape = 's32[1]{0}', space=sflag, size = 0x4, scoped, tag = 'scoped memory for tpu_custom_call.1']
    #allocation4 [shape = 's32[1]{0}', space=sflag, size = 0x4, scoped, tag = 'scoped memory for tpu_custom_call.1']
    #allocation5 [shape = 'u8[1024]{0}', space=vmem, size = 0x400, scoped, tag = 'input window, operand 1, single buffered']
    #allocation6 [shape = 's32[1]{0}', space=sflag, size = 0x4, scoped, tag = 'scoped memory for tpu_custom_call.1']
    #allocation7 [shape = 'u8[2048]{0}', space=vmem, size = 0x800, scoped, tag = 'output window, operand 0, single buffered']
    %7 = vsyncpa [#allocation3], 0
    %8 = vsyncpa [#allocation6], 0
    %9 = vsyncpa [#allocation4], 0
    // Predicated region
    $region2: #{tpu_custom_call.1} parent=1 // pred_check
      _
    $region3: #{tpu_custom_call.1} parent=1 // pred_check_branch
      %11 = sbr.rel (0) target = $region5
    $region4: #{tpu_custom_call.1} parent=1 // pred_region
      %s13 = ssub.s32 64, 64
      %14 = vsyncadd [#allocation3], %s13
      %s15 = sshll.u32 [#allocation2], 4
      %s16 = int_to_ptr.vmem [resolvable:$true] %s15
      %21 = dma.hbm_to_vmem [thread:$0]  %s0, 64, %s16, [#allocation3], 32, 32, 2
    $region5: #{tpu_custom_call.1} parent=1 // pred_fallthru
      _
    // Predicated region
    $region6: #{tpu_custom_call.1} parent=1 // pred_check
      _
    $region7: #{tpu_custom_call.1} parent=1 // pred_check_branch
      %23 = sbr.rel (0) target = $region9
    $region8: #{tpu_custom_call.1} parent=1 // pred_region
      %s25 = ssub.s32 32, 32
      %26 = vsyncadd [#allocation6], %s25
      %s28 = sshll.u32 [#allocation5], 4
      %s29 = int_to_ptr.vmem [resolvable:$true] %s28
      %31 = dma.hbm_to_vmem [thread:$0]  %s1, 32, %s29, [#allocation6]
    $region9: #{tpu_custom_call.1} parent=1 // pred_fallthru
      _
    // Predicated region
    $region10: #{tpu_custom_call.1} parent=1 // pred_check
      _
    $region11: #{tpu_custom_call.1} parent=1 // pred_check_branch
      %33 = sbr.rel (0) target = $region13
    $region12: #{tpu_custom_call.1} parent=1 // pred_region
      %34 = dma.done [#allocation3], 64
    $region13: #{tpu_custom_call.1} parent=1 // pred_fallthru
      _
    // Predicated region
    $region14: #{tpu_custom_call.1} parent=1 // pred_check
      _
    $region15: #{tpu_custom_call.1} parent=1 // pred_check_branch
      %36 = sbr.rel (0) target = $region17
    $region16: #{tpu_custom_call.1} parent=1 // pred_region
      %37 = dma.done [#allocation6], 32
    $region17: #{tpu_custom_call.1} parent=1 // pred_fallthru
      _
    %v38 = vld [vmem:[#allocation2] sm:$0x3]
    %v39 = vld [vmem:[#allocation2 + $0x2] sm:$0x3]
    %v40 = vld [vmem:[#allocation5] sm:$0x3]
    %v41 = vadd.f32 %v38, %v40
    %v42 = vadd.f32 %v39, %v40
    %43 = vst [vmem:[#allocation7] sm:$0x3] %v41
    %44 = vst [vmem:[#allocation7 + $0x2] sm:$0x3] %v42
    // Predicated region
    $region18: #{tpu_custom_call.1} parent=1 // pred_check
      _
    $region19: #{tpu_custom_call.1} parent=1 // pred_check_branch
      %46 = sbr.rel (0) target = $region21
    $region20: #{tpu_custom_call.1} parent=1 // pred_region
      %s48 = ssub.s32 64, 64
      %49 = vsyncadd [#allocation4], %s48
      %s50 = sshll.u32 [#allocation7], 4
      %s51 = int_to_ptr.vmem [resolvable:$true] %s50
      %56 = dma.vmem_to_hbm [thread:$0]  %s51, 64, %s2, [#allocation4], 32, 32, 2
    $region21: #{tpu_custom_call.1} parent=1 // pred_fallthru
      _
    // Predicated region
    $region22: #{tpu_custom_call.1} parent=1 // pred_check
      _
    $region23: #{tpu_custom_call.1} parent=1 // pred_check_branch
      %58 = sbr.rel (0) target = $region25
    $region24: #{tpu_custom_call.1} parent=1 // pred_region
      %59 = dma.done [#allocation4], 64
    $region25: #{tpu_custom_call.1} parent=1 // pred_fallthru
      _
    %60 = vsyncpa [#allocation3], 1
    %61 = vsyncpa [#allocation6], 1
    %62 = vsyncpa [#allocation4], 1

</llo_original>
